<compile_context>
chip_gen: v7x
topology: tpu7x:2x2x1
jax: 0.10.0
libtpu: 0.0.40
codegen_flags: <defaults>
</compile_context>

<pallas_src>
import functools

import jax
import jax.numpy as jnp
from jax.experimental import pallas as pl
from jax.experimental.pallas import tpu as pltpu


def _round_up(n, m):
    return ((n + m - 1) // m) * m


_ACTIVATIONS = {
    "tanh": jnp.tanh,
    "relu": jax.nn.relu,
    "sigmoid": jax.nn.sigmoid,
}


@functools.cache
def _has_bf16_eup():
    """True on chips whose EUP/VPU handle bf16 natively (v6e, v7x)."""
    try:
        kind = jax.devices()[0].device_kind.lower()
    except Exception:
        return False
    return not any(tag in kind for tag in ("v2", "v3", "v4", "v5"))


@functools.cache
def _batch_dim_semantics():
    """Prefer CORE_PARALLEL (shards the batch grid across v7x's two TensorCores);
    fall back to plain "parallel" if the current chip/compiler rejects it."""
    sem = getattr(pltpu, "CORE_PARALLEL", None)
    if sem is None:
        return "parallel"

    def _probe_kernel(x_ref, o_ref):
        o_ref[...] = x_ref[...] + 1.0

    try:
        probe = pl.pallas_call(
            _probe_kernel,
            out_shape=jax.ShapeDtypeStruct((8, 256), jnp.float32),
            grid=(2,),
            in_specs=[pl.BlockSpec((8, 128), lambda i: (0, i))],
            out_specs=pl.BlockSpec((8, 128), lambda i: (0, i)),
            compiler_params=pltpu.CompilerParams(dimension_semantics=(sem,)),
        )
        jax.block_until_ready(probe(jnp.zeros((8, 256), jnp.float32)))
        return sem
    except Exception:
        return "parallel"


def _make_kernel(activation, act_in_compute_dtype):
    act_fn = _ACTIVATIONS[activation]

    def kernel(xt_ref, w1_ref, b1_ref, w2_ref, b2_ref, w3_ref, b3_ref, o_ref):
        """One batch tile, batch along lanes.

        xt_ref: (D, TB)   x^T tile (compute_dtype)
        w1_ref: (H1, D)   b1_ref: (H1, 1) f32
        w2_ref: (H2, H1)  b2_ref: (H2, 1) f32
        w3_ref: (H2, 1)   f32 value-head column
        b3_ref: (1, 1)    f32 scalar in SMEM
        o_ref:  (1, TB)   f32 lane-dense output tile
        """
        cdt = w1_ref.dtype
        act_dt = cdt if act_in_compute_dtype else jnp.float32

        # Layer 1: (H1, D) @ (D, TB) -> (H1, TB); MXU accumulates in f32.
        a1 = jnp.dot(w1_ref[...], xt_ref[...],
                     preferred_element_type=jnp.float32) + b1_ref[...]
        h1 = act_fn(a1.astype(act_dt))           # bf16 EUP path on v6e/v7x

        # Layer 2: (H2, H1) @ (H1, TB) -> (H2, TB).
        a2 = jnp.dot(w2_ref[...], h1.astype(cdt),
                     preferred_element_type=jnp.float32) + b2_ref[...]
        h2 = act_fn(a2.astype(act_dt))

        # Value head: VPU multiply + sublane reduction -> lane-dense (1, TB).
        v = jnp.sum(h2.astype(jnp.float32) * w3_ref[...], axis=0, keepdims=True)
        o_ref[...] = (v + b3_ref[0, 0]).astype(o_ref.dtype)

    return kernel


def value_forward_transposed(xt, w1, b1, w2, b2, w3, b3, *,
                             activation="tanh", block_batch=2048,
                             compute_dtype=jnp.float32,
                             act_in_compute_dtype=None,
                             dimension_semantics=None):
    """Value MLP forward for x already in transposed (state_dim, B) layout.

    Using this entry point (producing xt directly upstream) avoids the extra HBM
    round-trip of the wrapper-side x.T in `value_forward`.

    Args (PyTorch nn.Linear layout for the weights):
      xt: (state_dim, B) float32
      w1: (H1, state_dim), b1: (H1,)
      w2: (H2, H1),        b2: (H2,)
      w3: (1, H2),         b3: (1,)
    Returns:
      (B, 1) float32 value estimates.
    """
    D, B = xt.shape
    H1 = w1.shape[0]
    H2 = w2.shape[0]

    if act_in_compute_dtype is None:
        # bf16 tanh only where the EUP supports it (v6e/v7x); f32 otherwise (v5e).
        act_in_compute_dtype = (
            jnp.dtype(compute_dtype) != jnp.dtype(jnp.float32)) and _has_bf16_eup()
    if dimension_semantics is None:
        dimension_semantics = _batch_dim_semantics()

    # Batch tile: multiple of 128 (lane-dense output), capped at block_batch.
    tb = min(_round_up(block_batch, 128), _round_up(B, 128))
    b_pad = _round_up(B, tb)
    if b_pad != B:
        xt = jnp.pad(xt, ((0, 0), (0, b_pad - B)))
    xt = xt.astype(compute_dtype)

    w1c = w1.astype(compute_dtype)
    w2c = w2.astype(compute_dtype)
    b1c = b1.reshape(H1, 1).astype(jnp.float32)
    b2c = b2.reshape(H2, 1).astype(jnp.float32)
    w3c = w3.reshape(H2, 1).astype(jnp.float32)
    b3c = b3.reshape(1, 1).astype(jnp.float32)

    grid = (b_pad // tb,)
    itemsize = jnp.dtype(compute_dtype).itemsize
    cost = pl.CostEstimate(
        flops=2 * b_pad * (D * H1 + H1 * H2 + H2),
        transcendentals=(b_pad * (H1 + H2)) if activation != "relu" else 0,
        bytes_accessed=(b_pad * D * itemsize + b_pad * 4
                        + (H1 * D + H2 * H1) * itemsize
                        + (H1 + 2 * H2 + 1) * 4),
    )

    def resident(shape):   # constant block index -> stays resident in VMEM
        return pl.BlockSpec(shape, lambda i: (0, 0))

    out = pl.pallas_call(
        _make_kernel(activation, act_in_compute_dtype),
        out_shape=jax.ShapeDtypeStruct((1, b_pad), jnp.float32),
        grid=grid,
        in_specs=[
            pl.BlockSpec((D, tb), lambda i: (0, i)),     # x^T batch stream
            resident((H1, D)),                           # W1
            resident((H1, 1)),                           # b1
            resident((H2, H1)),                          # W2
            resident((H2, 1)),                           # b2
            resident((H2, 1)),                           # w3 column
            pl.BlockSpec((1, 1), lambda i: (0, 0),
                         memory_space=pltpu.MemorySpace.SMEM),  # b3 scalar
        ],
        out_specs=pl.BlockSpec((1, tb), lambda i: (0, i)),
        compiler_params=pltpu.CompilerParams(
            dimension_semantics=(dimension_semantics,)),
        cost_estimate=cost,
    )(xt, w1c, b1c, w2c, b2c, w3c, b3c)

    return out[:, :B].reshape(B, 1)


def value_forward(x, w1, b1, w2, b2, w3, b3, **kwargs):
    """Value MLP forward for PyTorch-layout x of shape (B, state_dim)."""
    return value_forward_transposed(x.T, w1, b1, w2, b2, w3, b3, **kwargs)


def init_value_params(key, state_dim, hidden_size=(128, 128)):
    """Deterministic synthetic init mirroring nn.Linear (weight: (out, in))."""
    h1, h2 = hidden_size
    k1, k2, k3, k4, k5, k6 = jax.random.split(key, 6)

    def uniform_init(k, shape, fan_in):
        bound = 1.0 / jnp.sqrt(fan_in)
        return jax.random.uniform(k, shape, jnp.float32, -bound, bound)

    w1 = uniform_init(k1, (h1, state_dim), state_dim)
    b1 = uniform_init(k2, (h1,), state_dim)
    w2 = uniform_init(k3, (h2, h1), h1)
    b2 = uniform_init(k4, (h2,), h1)
    w3 = uniform_init(k5, (1, h2), h2) * 0.1            # value_head.weight.mul_(0.1)
    b3 = uniform_init(k6, (1,), h2) * 0.0               # value_head.bias.mul_(0.0)
    return w1, b1, w2, b2, w3, b3


def _ref_forward(x, w1, b1, w2, b2, w3, b3):
    h1 = jnp.tanh(x @ w1.T + b1)
    h2 = jnp.tanh(h1 @ w2.T + b2)
    return h2 @ w3.T + b3


if __name__ == "__main__":
    state_dim = 16
    hidden_size = (128, 128)

    key = jax.random.PRNGKey(0)
    kx, kp = jax.random.split(key)
    params = init_value_params(kp, state_dim, hidden_size)

    # Case 1: tiny batch (padded to one 128-lane tile), f32 throughout.
    x1 = jax.random.normal(kx, (8, state_dim), dtype=jnp.float32)
    out1 = jax.block_until_ready(value_forward(x1, *params))
    ref1 = _ref_forward(x1, *params)
    assert out1.shape == (8, 1)
    assert jnp.allclose(out1, ref1, atol=1e-4, rtol=1e-4), "case 1 mismatch"

    # Case 2: batch not a multiple of the tile, spanning 3 grid steps.
    x2 = jax.random.normal(jax.random.PRNGKey(1), (300, state_dim), dtype=jnp.float32)
    out2 = jax.block_until_ready(value_forward(x2, *params, block_batch=128))
    ref2 = _ref_forward(x2, *params)
    assert out2.shape == (300, 1)
    assert jnp.allclose(out2, ref2, atol=1e-4, rtol=1e-4), "case 2 mismatch"

    # Case 3: bf16 MXU operands (+ bf16 tanh where the chip has a bf16 EUP).
    out3 = jax.block_until_ready(
        value_forward(x2, *params, block_batch=128, compute_dtype=jnp.bfloat16))
    assert jnp.allclose(out3, ref2, atol=5e-2, rtol=5e-2), "case 3 mismatch"

    # Case 4: pre-transposed (D, B) input, skipping the wrapper-side x.T round-trip.
    out4 = jax.block_until_ready(value_forward_transposed(x2.T, *params))
    assert jnp.allclose(out4, ref2, atol=1e-4, rtol=1e-4), "case 4 mismatch"

    print("KERNEL_OK")
</pallas_src>

<mosaic_0001>
module attributes {stable_mosaic.version = 11 : i64} {
  func.func @_probe_kernel(%arg0: i32, %arg1: memref<8x128xf32, #tpu.memory_space<vmem>>, %arg2: memref<8x128xf32, #tpu.memory_space<vmem>>) attributes {dimension_semantics = [#tpu.dimension_semantics<core_parallel>], iteration_bounds = array<i64: 2>, scalar_prefetch = 0 : i64, scratch_operands = 0 : i64, tpu.core_type = #tpu.core_type<tc>, window_params = [{transform_indices = @transform_0, window_bounds = array<i64: 8, 128>}, {transform_indices = @transform_1, window_bounds = array<i64: 8, 128>}]} {
    %c0 = arith.constant 0 : index
    %c0_0 = arith.constant 0 : index
    %0 = vector.load %arg1[%c0, %c0_0] : memref<8x128xf32, #tpu.memory_space<vmem>>, vector<8x128xf32>
    %cst = arith.constant 1.000000e+00 : f32
    %1 = vector.broadcast %cst : f32 to vector<8x128xf32>
    %2 = arith.addf %0, %1 : vector<8x128xf32>
    %c0_1 = arith.constant 0 : index
    %c0_2 = arith.constant 0 : index
    %3 = vector.load %arg2[%c0_1, %c0_2] : memref<8x128xf32, #tpu.memory_space<vmem>>, vector<8x128xf32>
    tpu.vector_store %arg2[%c0_1, %c0_2], %2 {strides = array<i32>} : memref<8x128xf32, #tpu.memory_space<vmem>>, vector<8x128xf32>,
    return
  }
  func.func @transform_0(%arg0: i32) -> (i32, i32) {
    %c0_i32 = arith.constant 0 : i32
    %c0_i32_0 = arith.constant 0 : i32
    return %c0_i32, %arg0 : i32, i32
  }
  func.func @transform_1(%arg0: i32) -> (i32, i32) {
    %c0_i32 = arith.constant 0 : i32
    %c0_i32_0 = arith.constant 0 : i32
    return %c0_i32, %arg0 : i32, i32
  }
}

module attributes {stable_mosaic.version = 11 : i64} {
  func.func @kernel(%arg0: i32, %arg1: memref<16x128xf32, #tpu.memory_space<vmem>>, %arg2: memref<128x16xf32, #tpu.memory_space<vmem>>, %arg3: memref<128x1xf32, #tpu.memory_space<vmem>>, %arg4: memref<128x128xf32, #tpu.memory_space<vmem>>, %arg5: memref<128x1xf32, #tpu.memory_space<vmem>>, %arg6: memref<128x1xf32, #tpu.memory_space<vmem>>, %arg7: memref<1x1xf32, #tpu.memory_space<smem>>, %arg8: memref<1x128xf32, #tpu.memory_space<vmem>>) attributes {dimension_semantics = [#tpu.dimension_semantics<parallel>], iteration_bounds = array<i64: 1>, scalar_prefetch = 0 : i64, scratch_operands = 0 : i64, tpu.core_type = #tpu.core_type<tc>, window_params = [{transform_indices = @transform_0, window_bounds = array<i64: 16, 128>}, {pipeline_mode = #tpu.pipeline_mode<synchronous>, transform_indices = @transform_1, window_bounds = array<i64: 128, 16>}, {pipeline_mode = #tpu.pipeline_mode<synchronous>, transform_indices = @transform_2, window_bounds = array<i64: 128, 1>}, {pipeline_mode = #tpu.pipeline_mode<synchronous>, transform_indices = @transform_3, window_bounds = array<i64: 128, 128>}, {pipeline_mode = #tpu.pipeline_mode<synchronous>, transform_indices = @transform_4, window_bounds = array<i64: 128, 1>}, {pipeline_mode = #tpu.pipeline_mode<synchronous>, transform_indices = @transform_5, window_bounds = array<i64: 128, 1>}, {transform_indices = @transform_6, window_bounds = array<i64: 1, 1>}, {transform_indices = @transform_7, window_bounds = array<i64: 1, 128>}]} {
    %c0 = arith.constant 0 : index
    %c0_0 = arith.constant 0 : index
    %0 = vector.load %arg2[%c0, %c0_0] : memref<128x16xf32, #tpu.memory_space<vmem>>, vector<128x16xf32>
    %c0_1 = arith.constant 0 : index
    %c0_2 = arith.constant 0 : index
    %1 = vector.load %arg1[%c0_1, %c0_2] : memref<16x128xf32, #tpu.memory_space<vmem>>, vector<16x128xf32>
    %cst = arith.constant dense<0.000000e+00> : vector<128x128xf32>
    %2 = tpu.matmul %0, %1, %cst {dimension_numbers = #tpu.dot_dimension_numbers<[1], [0], [0], [1], [0, 0, 1, 1], [], []>} : vector<128x16xf32>, vector<16x128xf32>, vector<128x128xf32> -> vector<128x128xf32>
    %c0_3 = arith.constant 0 : index
    %c0_4 = arith.constant 0 : index
    %3 = vector.load %arg3[%c0_3, %c0_4] : memref<128x1xf32, #tpu.memory_space<vmem>>, vector<128x1xf32>
    %4 = vector.broadcast %3 : vector<128x1xf32> to vector<128x128xf32>
    %5 = arith.addf %2, %4 : vector<128x128xf32>
    %6 = math.tanh %5 : vector<128x128xf32>
    %c0_5 = arith.constant 0 : index
    %c0_6 = arith.constant 0 : index
    %7 = vector.load %arg4[%c0_5, %c0_6] : memref<128x128xf32, #tpu.memory_space<vmem>>, vector<128x128xf32>
    %cst_7 = arith.constant dense<0.000000e+00> : vector<128x128xf32>
    %8 = tpu.matmul %7, %6, %cst_7 {dimension_numbers = #tpu.dot_dimension_numbers<[1], [0], [0], [1], [0, 0, 1, 1], [], []>} : vector<128x128xf32>, vector<128x128xf32>, vector<128x128xf32> -> vector<128x128xf32>
    %c0_8 = arith.constant 0 : index
    %c0_9 = arith.constant 0 : index
    %9 = vector.load %arg5[%c0_8, %c0_9] : memref<128x1xf32, #tpu.memory_space<vmem>>, vector<128x1xf32>
    %10 = vector.broadcast %9 : vector<128x1xf32> to vector<128x128xf32>
    %11 = arith.addf %8, %10 : vector<128x128xf32>
    %12 = math.tanh %11 : vector<128x128xf32>
    %c0_10 = arith.constant 0 : index
    %c0_11 = arith.constant 0 : index
    %13 = vector.load %arg6[%c0_10, %c0_11] : memref<128x1xf32, #tpu.memory_space<vmem>>, vector<128x1xf32>
    %14 = vector.broadcast %13 : vector<128x1xf32> to vector<128x128xf32>
    %15 = arith.mulf %12, %14 : vector<128x128xf32>
    %cst_12 = arith.constant dense<0.000000e+00> : vector<128xf32>
    %16 = vector.multi_reduction <add>, %15, %cst_12 [0] : vector<128x128xf32> to vector<128xf32>
    %17 = vector.shape_cast %16 : vector<128xf32> to vector<1x128xf32>
    %c0_13 = arith.constant 0 : index
    %c0_14 = arith.constant 0 : index
    %18 = memref.load %arg7[%c0_13, %c0_14] : memref<1x1xf32, #tpu.memory_space<smem>>
    %19 = vector.broadcast %18 : f32 to vector<1x128xf32>
    %20 = arith.addf %17, %19 : vector<1x128xf32>
    %c0_15 = arith.constant 0 : index
    %c0_16 = arith.constant 0 : index
    %21 = vector.load %arg8[%c0_15, %c0_16] : memref<1x128xf32, #tpu.memory_space<vmem>>, vector<1x128xf32>
    tpu.vector_store %arg8[%c0_15, %c0_16], %20 {strides = array<i32>} : memref<1x128xf32, #tpu.memory_space<vmem>>, vector<1x128xf32>,
    return
  }
  func.func @transform_0(%arg0: i32) -> (i32, i32) {
    %c0_i32 = arith.constant 0 : i32
    %c0_i32_0 = arith.constant 0 : i32
    return %c0_i32, %arg0 : i32, i32
  }
  func.func @transform_1(%arg0: i32) -> (i32, i32) {
    %c0_i32 = arith.constant 0 : i32
    %c0_i32_0 = arith.constant 0 : i32
    %c0_i32_1 = arith.constant 0 : i32
    return %c0_i32, %c0_i32_0 : i32, i32
  }
  func.func @transform_2(%arg0: i32) -> (i32, i32) {
    %c0_i32 = arith.constant 0 : i32
    %c0_i32_0 = arith.constant 0 : i32
    %c0_i32_1 = arith.constant 0 : i32
    return %c0_i32, %c0_i32_0 : i32, i32
  }
  func.func @transform_3(%arg0: i32) -> (i32, i32) {
    %c0_i32 = arith.constant 0 : i32
    %c0_i32_0 = arith.constant 0 : i32
    %c0_i32_1 = arith.constant 0 : i32
    return %c0_i32, %c0_i32_0 : i32, i32
  }
  func.func @transform_4(%arg0: i32) -> (i32, i32) {
    %c0_i32 = arith.constant 0 : i32
    %c0_i32_0 = arith.constant 0 : i32
    %c0_i32_1 = arith.constant 0 : i32
    return %c0_i32, %c0_i32_0 : i32, i32
  }
  func.func @transform_5(%arg0: i32) -> (i32, i32) {
    %c0_i32 = arith.constant 0 : i32
    %c0_i32_0 = arith.constant 0 : i32
    %c0_i32_1 = arith.constant 0 : i32
    return %c0_i32, %c0_i32_0 : i32, i32
  }
  func.func @transform_6(%arg0: i32) -> (i32, i32) {
    %c0_i32 = arith.constant 0 : i32
    %c0_i32_0 = arith.constant 0 : i32
    %c0_i32_1 = arith.constant 0 : i32
    return %c0_i32, %c0_i32_0 : i32, i32
  }
  func.func @transform_7(%arg0: i32) -> (i32, i32) {
    %c0_i32 = arith.constant 0 : i32
    %c0_i32_0 = arith.constant 0 : i32
    return %c0_i32, %arg0 : i32, i32
  }
}

</mosaic_0001>

<llo_original>
// kernel: tpu_custom_call.1
$region0: #{tpu_custom_call.1}
  #allocation0 [shape = 'u32[]', space=smem, size = 0x4, offset = 0x4, fixed_abs, tag = 'smem constant byte address 0x4 - core index']
  #allocation1 [shape = 'u32[144,128]{1,0:T(1,128)}', space=vmem, size = 0x12000, scoped, tag = 'internal scratch']
  #allocation2 [shape = 'f32[1,1]{1,0:T(1,128)S(6)}', space=smem, size = 0x200, scoped, tag = 'scoped memory for tpu_custom_call.1']
  %s0 = inlined_call_operand.vmem [shape: f32[16,128], index: 0, kind: input, shape index: {}]
  %s1 = inlined_call_operand.vmem [shape: f32[128,16], index: 1, kind: input, shape index: {}]
  %s2 = inlined_call_operand.vmem [shape: f32[128,1], index: 2, kind: input, shape index: {}]
  %s3 = inlined_call_operand.vmem [shape: f32[128,128], index: 3, kind: input, shape index: {}]
  %s4 = inlined_call_operand.vmem [shape: f32[128,1], index: 4, kind: input, shape index: {}]
  %s5 = inlined_call_operand.vmem [shape: f32[128,1], index: 5, kind: input, shape index: {}]
  %s6 = inlined_call_operand.<no memory space> [shape: f32[1,1], index: 6, kind: input, shape index: {}]
  %s7 = inlined_call_operand.hbm [shape: f32[1,128], index: 7, kind: output, shape index: {}]
  %s8 = sld [smem:[#allocation0]]
  $region38: #{tpu_custom_call.1} parent=0
    _
  %s10 = ssub.s32 1, %s8
  %s11 = scalar_select 0, %s10, %s8
  %12 = sst [smem:[#allocation2]] %s6
  $region1: #{tpu_custom_call.1} parent=0
    #allocation3 [shape = 'u8[512]{0}', space=vmem, size = 0x400, scoped, tag = 'output window, operand 0, single buffered']
    #allocation4 [shape = 's32[1]{0}', space=sflag, size = 0x4, scoped, tag = 'scoped memory for tpu_custom_call.1']
    %13 = vsyncpa [#allocation4], 0
    // Predicated region
    $region2: #{tpu_custom_call.1} parent=1 // pred_check
      _
    $region3: #{tpu_custom_call.1} parent=1 // pred_check_branch
      %15 = sbr.rel (0) target = $region5
    $region4: #{tpu_custom_call.1} parent=1 // pred_region
      _
    $region5: #{tpu_custom_call.1} parent=1 // pred_fallthru
      _
    // Predicated region
    $region6: #{tpu_custom_call.1} parent=1 // pred_check
      _
    $region7: #{tpu_custom_call.1} parent=1 // pred_check_branch
      %17 = sbr.rel (0) target = $region9
    $region8: #{tpu_custom_call.1} parent=1 // pred_region
      _
    $region9: #{tpu_custom_call.1} parent=1 // pred_fallthru
      _
    // Predicated region
    $region10: #{tpu_custom_call.1} parent=1 // pred_check
      _
    $region11: #{tpu_custom_call.1} parent=1 // pred_check_branch
      %19 = sbr.rel (0) target = $region13
    $region12: #{tpu_custom_call.1} parent=1 // pred_region
      _
    $region13: #{tpu_custom_call.1} parent=1 // pred_fallthru
      _
    // Predicated region
    $region14: #{tpu_custom_call.1} parent=1 // pred_check
      _
    $region15: #{tpu_custom_call.1} parent=1 // pred_check_branch
      %21 = sbr.rel (0) target = $region17
    $region16: #{tpu_custom_call.1} parent=1 // pred_region
      _
    $region17: #{tpu_custom_call.1} parent=1 // pred_fallthru
      _
    // Predicated region
    $region18: #{tpu_custom_call.1} parent=1 // pred_check
      _
    $region19: #{tpu_custom_call.1} parent=1 // pred_check_branch
      %23 = sbr.rel (0) target = $region21
    $region20: #{tpu_custom_call.1} parent=1 // pred_region
      _
    $region21: #{tpu_custom_call.1} parent=1 // pred_fallthru
      _
    // Predicated region
    $region22: #{tpu_custom_call.1} parent=1 // pred_check
      _
    $region23: #{tpu_custom_call.1} parent=1 // pred_check_branch
      %25 = sbr.rel (0) target = $region25
    $region24: #{tpu_custom_call.1} parent=1 // pred_region
      _
    $region25: #{tpu_custom_call.1} parent=1 // pred_fallthru
      _
    // Predicated region
    $region26: #{tpu_custom_call.1} parent=1 // pred_check
      _
    $region27: #{tpu_custom_call.1} parent=1 // pred_check_branch
      %27 = sbr.rel (0) target = $region29
    $region28: #{tpu_custom_call.1} parent=1 // pred_region
      _
    $region29: #{tpu_custom_call.1} parent=1 // pred_fallthru
      _
    %v28 = vld [vmem:[%s1] sm:$0xff]
    %v29 = vld [vmem:[%s1 + $0x8] sm:$0xff]
    %v30 = vld [vmem:[%s1 + $0x10] sm:$0xff]
    %v31 = vld [vmem:[%s1 + $0x18] sm:$0xff]
    %v32 = vld [vmem:[%s1 + $0x20] sm:$0xff]
    %v33 = vld [vmem:[%s1 + $0x28] sm:$0xff]
    %v34 = vld [vmem:[%s1 + $0x30] sm:$0xff]
    %v35 = vld [vmem:[%s1 + $0x38] sm:$0xff]
    %v36 = vld [vmem:[%s1 + $0x40] sm:$0xff]
    %v37 = vld [vmem:[%s1 + $0x48] sm:$0xff]
    %v38 = vld [vmem:[%s1 + $0x50] sm:$0xff]
    %v39 = vld [vmem:[%s1 + $0x58] sm:$0xff]
    %v40 = vld [vmem:[%s1 + $0x60] sm:$0xff]
    %v41 = vld [vmem:[%s1 + $0x68] sm:$0xff]
    %v42 = vld [vmem:[%s1 + $0x70] sm:$0xff]
    %v43 = vld [vmem:[%s1 + $0x78] sm:$0xff]
    %v44 = vld [vmem:[%s0] sm:$0xff]
    %v45 = vld [vmem:[%s0 + $0x8] sm:$0xff]
    %v46 = vld [vmem:[%s2] sm:$0xff]
    %v47 = vld [vmem:[%s2 + $0x8] sm:$0xff]
    %v48 = vld [vmem:[%s2 + $0x10] sm:$0xff]
    %v49 = vld [vmem:[%s2 + $0x18] sm:$0xff]
    %v50 = vld [vmem:[%s2 + $0x20] sm:$0xff]
    %v51 = vld [vmem:[%s2 + $0x28] sm:$0xff]
    %v52 = vld [vmem:[%s2 + $0x30] sm:$0xff]
    %v53 = vld [vmem:[%s2 + $0x38] sm:$0xff]
    %v54 = vld [vmem:[%s2 + $0x40] sm:$0xff]
    %v55 = vld [vmem:[%s2 + $0x48] sm:$0xff]
    %v56 = vld [vmem:[%s2 + $0x50] sm:$0xff]
    %v57 = vld [vmem:[%s2 + $0x58] sm:$0xff]
    %v58 = vld [vmem:[%s2 + $0x60] sm:$0xff]
    %v59 = vld [vmem:[%s2 + $0x68] sm:$0xff]
    %v60 = vld [vmem:[%s2 + $0x70] sm:$0xff]
    %v61 = vld [vmem:[%s2 + $0x78] sm:$0xff]
    %63 = vset.pattern.permute.xlu0 0
    %64 = vperm.xlu0 %63, %v46
    %v65 = vpop.permute.xlu0 %64
    %68 = vset.pattern.permute.xlu0 0
    %69 = vperm.xlu0 %68, %v47
    %v70 = vpop.permute.xlu0 %69
    %73 = vset.pattern.permute.xlu0 0
    %74 = vperm.xlu0 %73, %v48
    %v75 = vpop.permute.xlu0 %74
    %78 = vset.pattern.permute.xlu0 0
    %79 = vperm.xlu0 %78, %v49
    %v80 = vpop.permute.xlu0 %79
    %83 = vset.pattern.permute.xlu0 0
    %84 = vperm.xlu0 %83, %v50
    %v85 = vpop.permute.xlu0 %84
    %88 = vset.pattern.permute.xlu0 0
    %89 = vperm.xlu0 %88, %v51
    %v90 = vpop.permute.xlu0 %89
    %93 = vset.pattern.permute.xlu0 0
    %94 = vperm.xlu0 %93, %v52
    %v95 = vpop.permute.xlu0 %94
    %98 = vset.pattern.permute.xlu0 0
    %99 = vperm.xlu0 %98, %v53
    %v100 = vpop.permute.xlu0 %99
    %103 = vset.pattern.permute.xlu0 0
    %104 = vperm.xlu0 %103, %v54
    %v105 = vpop.permute.xlu0 %104
    %108 = vset.pattern.permute.xlu0 0
    %109 = vperm.xlu0 %108, %v55
    %v110 = vpop.permute.xlu0 %109
    %113 = vset.pattern.permute.xlu0 0
    %114 = vperm.xlu0 %113, %v56
    %v115 = vpop.permute.xlu0 %114
    %118 = vset.pattern.permute.xlu0 0
    %119 = vperm.xlu0 %118, %v57
    %v120 = vpop.permute.xlu0 %119
    %123 = vset.pattern.permute.xlu0 0
    %124 = vperm.xlu0 %123, %v58
    %v125 = vpop.permute.xlu0 %124
    %128 = vset.pattern.permute.xlu0 0
    %129 = vperm.xlu0 %128, %v59
    %v130 = vpop.permute.xlu0 %129
    %133 = vset.pattern.permute.xlu0 0
    %134 = vperm.xlu0 %133, %v60
    %v135 = vpop.permute.xlu0 %134
    %138 = vset.pattern.permute.xlu0 0
    %139 = vperm.xlu0 %138, %v61
    %v140 = vpop.permute.xlu0 %139
    %vm142 = vcmask 130048
    %v144 = vsel %vm142, %v28, 0
    %v147 = vsel %vm142, %v29, 0
    %v150 = vsel %vm142, %v30, 0
    %v153 = vsel %vm142, %v31, 0
    %v156 = vsel %vm142, %v32, 0
    %v159 = vsel %vm142, %v33, 0
    %v162 = vsel %vm142, %v34, 0
    %v165 = vsel %vm142, %v35, 0
    %v168 = vsel %vm142, %v36, 0
    %v171 = vsel %vm142, %v37, 0
    %v174 = vsel %vm142, %v38, 0
    %v177 = vsel %vm142, %v39, 0
    %v180 = vsel %vm142, %v40, 0
    %v183 = vsel %vm142, %v41, 0
    %v186 = vsel %vm142, %v42, 0
    %v189 = vsel %vm142, %v43, 0
    %191 = vmatprep.subr.mxu0 0.0
    %192 = vmatpush1.msra.mxu0 %v44
    %193 = vmatprep.subr.mxu0 0.0
    %194 = vmatpush1.msra.mxu0 %v45
    %195 = vmatprep.subr.mxu0 0.0
    %196 = vmatpush1.msra.mxu0 0.0
    %197 = vmatprep.subr.mxu0 0.0
    %198 = vmatpush1.msra.mxu0 0.0
    %199 = vmatprep.subr.mxu0 0.0
    %200 = vmatpush1.msra.mxu0 0.0
    %201 = vmatprep.subr.mxu0 0.0
    %202 = vmatpush1.msra.mxu0 0.0
    %203 = vmatprep.subr.mxu0 0.0
    %204 = vmatpush1.msra.mxu0 0.0
    %205 = vmatprep.subr.mxu0 0.0
    %206 = vmatpush1.msra.mxu0 0.0
    %207 = vmatprep.subr.mxu0 0.0
    %208 = vmatpush1.msra.mxu0 0.0
    %209 = vmatprep.subr.mxu0 0.0
    %210 = vmatpush1.msra.mxu0 0.0
    %211 = vmatprep.subr.mxu0 0.0
    %212 = vmatpush1.msra.mxu0 0.0
    %213 = vmatprep.subr.mxu0 0.0
    %214 = vmatpush1.msra.mxu0 0.0
    %215 = vmatprep.subr.mxu0 0.0
    %216 = vmatpush1.msra.mxu0 0.0
    %217 = vmatprep.subr.mxu0 0.0
    %218 = vmatpush1.msra.mxu0 0.0
    %219 = vmatprep.subr.mxu0 0.0
    %220 = vmatpush1.msra.mxu0 0.0
    %221 = vmatprep.subr.mxu0 0.0
    %222 = vmatpush1.msra.mxu0 0.0
    %223 = vmatprep.subr.mxu0 0.0
    %224 = vmatpush1.msra.mxu0 0.0
    %225 = vmatprep.subr.mxu0 0.0
    %226 = vmatpush1.msra.mxu0 0.0
    %227 = vmatprep.subr.mxu0 0.0
    %228 = vmatpush1.msra.mxu0 0.0
    %229 = vmatprep.subr.mxu0 0.0
    %230 = vmatpush1.msra.mxu0 0.0
    %231 = vmatprep.subr.mxu0 0.0
    %232 = vmatpush1.msra.mxu0 0.0
    %233 = vmatprep.subr.mxu0 0.0
    %234 = vmatpush1.msra.mxu0 0.0
    %235 = vmatprep.subr.mxu0 0.0
    %236 = vmatpush1.msra.mxu0 0.0
    %237 = vmatprep.subr.mxu0 0.0
    %238 = vmatpush1.msra.mxu0 0.0
    %239 = vmatprep.subr.mxu0 0.0
    %240 = vmatpush1.msra.mxu0 0.0
    %241 = vmatprep.subr.mxu0 0.0
    %242 = vmatpush1.msra.mxu0 0.0
    %243 = vmatprep.subr.mxu0 0.0
    %244 = vmatpush1.msra.mxu0 0.0
    %245 = vmatprep.subr.mxu0 0.0
    %246 = vmatpush1.msra.mxu0 0.0
    %247 = vmatprep.subr.mxu0 0.0
    %248 = vmatpush1.msra.mxu0 0.0
    %249 = vmatprep.subr.mxu0 0.0
    %250 = vmatpush1.msra.mxu0 0.0
    %251 = vmatprep.subr.mxu0 0.0
    %252 = vmatpush1.msra.mxu0 0.0
    %253 = vmatprep.subr.mxu0 0.0
    %254 = vmatpush1.msra.mxu0 0.0
    %255 = vmatprep.mubr.f32.mxu0 0.0
    %256 = vmatmul.mubr.f32.gmra.mrb[0].mxu0 %v144
    %v257 = vpop.f32.mrb[0].mxu0
    %v258 = vadd.f32 %v65, %v257
    %v259 = vpop.f32.mrb[0].mxu0
    %260 = vmatprep.mubr.f32.mxu0 0.0
    %261 = vmatmul.mubr.f32.gmra.mrb[0].mxu0 %v147
    %v262 = vpop.f32.mrb[0].mxu0
    %v263 = vadd.f32 %v70, %v262
    %v264 = vpop.f32.mrb[0].mxu0
    %265 = vmatprep.mubr.f32.mxu0 0.0
    %266 = vmatmul.mubr.f32.gmra.mrb[0].mxu0 %v150
    %v267 = vpop.f32.mrb[0].mxu0
    %v268 = vadd.f32 %v75, %v267
    %v269 = vpop.f32.mrb[0].mxu0
    %270 = vmatprep.mubr.f32.mxu0 0.0
    %271 = vmatmul.mubr.f32.gmra.mrb[0].mxu0 %v153
    %v272 = vpop.f32.mrb[0].mxu0
    %v273 = vadd.f32 %v80, %v272
    %v274 = vpop.f32.mrb[0].mxu0
    %275 = vmatprep.mubr.f32.mxu0 0.0
    %276 = vmatmul.mubr.f32.gmra.mrb[0].mxu0 %v156
    %v277 = vpop.f32.mrb[0].mxu0
    %v278 = vadd.f32 %v85, %v277
    %v279 = vpop.f32.mrb[0].mxu0
    %280 = vmatprep.mubr.f32.mxu0 0.0
    %281 = vmatmul.mubr.f32.gmra.mrb[0].mxu0 %v159
    %v282 = vpop.f32.mrb[0].mxu0
    %v283 = vadd.f32 %v90, %v282
    %v284 = vpop.f32.mrb[0].mxu0
    %285 = vmatprep.mubr.f32.mxu0 0.0
    %286 = vmatmul.mubr.f32.gmra.mrb[0].mxu0 %v162
    %v287 = vpop.f32.mrb[0].mxu0
    %v288 = vadd.f32 %v95, %v287
    %v289 = vpop.f32.mrb[0].mxu0
    %290 = vmatprep.mubr.f32.mxu0 0.0
    %291 = vmatmul.mubr.f32.gmra.mrb[0].mxu0 %v165
    %v292 = vpop.f32.mrb[0].mxu0
    %v293 = vadd.f32 %v100, %v292
    %v294 = vpop.f32.mrb[0].mxu0
    %295 = vmatprep.mubr.f32.mxu0 0.0
    %296 = vmatmul.mubr.f32.gmra.mrb[0].mxu0 %v168
    %v297 = vpop.f32.mrb[0].mxu0
    %v298 = vadd.f32 %v105, %v297
    %v299 = vpop.f32.mrb[0].mxu0
    %300 = vmatprep.mubr.f32.mxu0 0.0
    %301 = vmatmul.mubr.f32.gmra.mrb[0].mxu0 %v171
    %v302 = vpop.f32.mrb[0].mxu0
    %v303 = vadd.f32 %v110, %v302
    %v304 = vpop.f32.mrb[0].mxu0
    %305 = vmatprep.mubr.f32.mxu0 0.0
    %306 = vmatmul.mubr.f32.gmra.mrb[0].mxu0 %v174
    %v307 = vpop.f32.mrb[0].mxu0
    %v308 = vadd.f32 %v115, %v307
    %v309 = vpop.f32.mrb[0].mxu0
    %310 = vmatprep.mubr.f32.mxu0 0.0
    %311 = vmatmul.mubr.f32.gmra.mrb[0].mxu0 %v177
    %v312 = vpop.f32.mrb[0].mxu0
    %v313 = vadd.f32 %v120, %v312
    %v314 = vpop.f32.mrb[0].mxu0
    %315 = vmatprep.mubr.f32.mxu0 0.0
    %316 = vmatmul.mubr.f32.gmra.mrb[0].mxu0 %v180
    %v317 = vpop.f32.mrb[0].mxu0
    %v318 = vadd.f32 %v125, %v317
    %v319 = vpop.f32.mrb[0].mxu0
    %320 = vmatprep.mubr.f32.mxu0 0.0
    %321 = vmatmul.mubr.f32.gmra.mrb[0].mxu0 %v183
    %v322 = vpop.f32.mrb[0].mxu0
    %v323 = vadd.f32 %v130, %v322
    %v324 = vpop.f32.mrb[0].mxu0
    %325 = vmatprep.mubr.f32.mxu0 0.0
    %326 = vmatmul.mubr.f32.gmra.mrb[0].mxu0 %v186
    %v327 = vpop.f32.mrb[0].mxu0
    %v328 = vadd.f32 %v135, %v327
    %v329 = vpop.f32.mrb[0].mxu0
    %330 = vmatprep.mubr.f32.mxu0 0.0
    %331 = vmatmul.mubr.f32.gmra.mrb[0].mxu0 %v189
    %v332 = vpop.f32.mrb[0].mxu0
    %v333 = vadd.f32 %v140, %v332
    %v334 = vpop.f32.mrb[0].mxu0
    %335 = vdwg.mxu0
    %v336 = vtanh.pop %v258
    %v337 = vtanh.pop %v263
    %v338 = vtanh.pop %v268
    %v339 = vtanh.pop %v273
    %v340 = vtanh.pop %v278
    %v341 = vtanh.pop %v283
    %v342 = vtanh.pop %v288
    %v343 = vtanh.pop %v293
    %v344 = vtanh.pop %v298
    %v345 = vtanh.pop %v303
    %v346 = vtanh.pop %v308
    %v347 = vtanh.pop %v313
    %v348 = vtanh.pop %v318
    %v349 = vtanh.pop %v323
    %v350 = vtanh.pop %v328
    %v351 = vtanh.pop %v333
    %v352 = vld [vmem:[%s3] sm:$0xff]
    %v353 = vld [vmem:[%s3 + $0x8] sm:$0xff]
    %v354 = vld [vmem:[%s3 + $0x10] sm:$0xff]
    %v355 = vld [vmem:[%s3 + $0x18] sm:$0xff]
    %v356 = vld [vmem:[%s3 + $0x20] sm:$0xff]
    %v357 = vld [vmem:[%s3 + $0x28] sm:$0xff]
    %v358 = vld [vmem:[%s3 + $0x30] sm:$0xff]
    %v359 = vld [vmem:[%s3 + $0x38] sm:$0xff]
    %v360 = vld [vmem:[%s3 + $0x40] sm:$0xff]
    %v361 = vld [vmem:[%s3 + $0x48] sm:$0xff]
    %v362 = vld [vmem:[%s3 + $0x50] sm:$0xff]
    %v363 = vld [vmem:[%s3 + $0x58] sm:$0xff]
    %v364 = vld [vmem:[%s3 + $0x60] sm:$0xff]
    %v365 = vld [vmem:[%s3 + $0x68] sm:$0xff]
    %v366 = vld [vmem:[%s3 + $0x70] sm:$0xff]
    %v367 = vld [vmem:[%s3 + $0x78] sm:$0xff]
    %v368 = vld [vmem:[%s4] sm:$0xff]
    %v369 = vld [vmem:[%s4 + $0x8] sm:$0xff]
    %v370 = vld [vmem:[%s4 + $0x10] sm:$0xff]
    %v371 = vld [vmem:[%s4 + $0x18] sm:$0xff]
    %v372 = vld [vmem:[%s4 + $0x20] sm:$0xff]
    %v373 = vld [vmem:[%s4 + $0x28] sm:$0xff]
    %v374 = vld [vmem:[%s4 + $0x30] sm:$0xff]
    %v375 = vld [vmem:[%s4 + $0x38] sm:$0xff]
    %v376 = vld [vmem:[%s4 + $0x40] sm:$0xff]
    %v377 = vld [vmem:[%s4 + $0x48] sm:$0xff]
    %v378 = vld [vmem:[%s4 + $0x50] sm:$0xff]
    %v379 = vld [vmem:[%s4 + $0x58] sm:$0xff]
    %v380 = vld [vmem:[%s4 + $0x60] sm:$0xff]
    %v381 = vld [vmem:[%s4 + $0x68] sm:$0xff]
    %v382 = vld [vmem:[%s4 + $0x70] sm:$0xff]
    %v383 = vld [vmem:[%s4 + $0x78] sm:$0xff]
    %385 = vset.pattern.permute.xlu0 0
    %386 = vperm.xlu0 %385, %v368
    %v387 = vpop.permute.xlu0 %386
    %390 = vset.pattern.permute.xlu0 0
    %391 = vperm.xlu0 %390, %v369
    %v392 = vpop.permute.xlu0 %391
    %395 = vset.pattern.permute.xlu0 0
    %396 = vperm.xlu0 %395, %v370
    %v397 = vpop.permute.xlu0 %396
    %400 = vset.pattern.permute.xlu0 0
    %401 = vperm.xlu0 %400, %v371
    %v402 = vpop.permute.xlu0 %401
    %405 = vset.pattern.permute.xlu0 0
    %406 = vperm.xlu0 %405, %v372
    %v407 = vpop.permute.xlu0 %406
    %410 = vset.pattern.permute.xlu0 0
    %411 = vperm.xlu0 %410, %v373
    %v412 = vpop.permute.xlu0 %411
    %415 = vset.pattern.permute.xlu0 0
    %416 = vperm.xlu0 %415, %v374
    %v417 = vpop.permute.xlu0 %416
    %420 = vset.pattern.permute.xlu0 0
    %421 = vperm.xlu0 %420, %v375
    %v422 = vpop.permute.xlu0 %421
    %425 = vset.pattern.permute.xlu0 0
    %426 = vperm.xlu0 %425, %v376
    %v427 = vpop.permute.xlu0 %426
    %430 = vset.pattern.permute.xlu0 0
    %431 = vperm.xlu0 %430, %v377
    %v432 = vpop.permute.xlu0 %431
    %435 = vset.pattern.permute.xlu0 0
    %436 = vperm.xlu0 %435, %v378
    %v437 = vpop.permute.xlu0 %436
    %440 = vset.pattern.permute.xlu0 0
    %441 = vperm.xlu0 %440, %v379
    %v442 = vpop.permute.xlu0 %441
    %445 = vset.pattern.permute.xlu0 0
    %446 = vperm.xlu0 %445, %v380
    %v447 = vpop.permute.xlu0 %446
    %450 = vset.pattern.permute.xlu0 0
    %451 = vperm.xlu0 %450, %v381
    %v452 = vpop.permute.xlu0 %451
    %455 = vset.pattern.permute.xlu0 0
    %456 = vperm.xlu0 %455, %v382
    %v457 = vpop.permute.xlu0 %456
    %460 = vset.pattern.permute.xlu0 0
    %461 = vperm.xlu0 %460, %v383
    %v462 = vpop.permute.xlu0 %461
    %464 = vmatprep.subr.mxu0 0.0
    %465 = vmatpush1.msra.mxu0 %v336
    %466 = vmatprep.subr.mxu0 0.0
    %467 = vmatpush1.msra.mxu0 %v337
    %468 = vmatprep.subr.mxu0 0.0
    %469 = vmatpush1.msra.mxu0 %v338
    %470 = vmatprep.subr.mxu0 0.0
    %471 = vmatpush1.msra.mxu0 %v339
    %472 = vmatprep.subr.mxu0 0.0
    %473 = vmatpush1.msra.mxu0 %v340
    %474 = vmatprep.subr.mxu0 0.0
    %475 = vmatpush1.msra.mxu0 %v341
    %476 = vmatprep.subr.mxu0 0.0
    %477 = vmatpush1.msra.mxu0 %v342
    %478 = vmatprep.subr.mxu0 0.0
    %479 = vmatpush1.msra.mxu0 %v343
    %480 = vmatprep.subr.mxu0 0.0
    %481 = vmatpush1.msra.mxu0 %v344
    %482 = vmatprep.subr.mxu0 0.0
    %483 = vmatpush1.msra.mxu0 %v345
    %484 = vmatprep.subr.mxu0 0.0
    %485 = vmatpush1.msra.mxu0 %v346
    %486 = vmatprep.subr.mxu0 0.0
    %487 = vmatpush1.msra.mxu0 %v347
    %488 = vmatprep.subr.mxu0 0.0
    %489 = vmatpush1.msra.mxu0 %v348
    %490 = vmatprep.subr.mxu0 0.0
    %491 = vmatpush1.msra.mxu0 %v349
    %492 = vmatprep.subr.mxu0 0.0
    %493 = vmatpush1.msra.mxu0 %v350
    %494 = vmatprep.subr.mxu0 0.0
    %495 = vmatpush1.msra.mxu0 %v351
    %496 = vmatprep.subr.mxu0 0.0
    %497 = vmatpush1.msra.mxu0 0.0
    %498 = vmatprep.subr.mxu0 0.0
    %499 = vmatpush1.msra.mxu0 0.0
    %500 = vmatprep.subr.mxu0 0.0
    %501 = vmatpush1.msra.mxu0 0.0
    %502 = vmatprep.subr.mxu0 0.0
    %503 = vmatpush1.msra.mxu0 0.0
    %504 = vmatprep.subr.mxu0 0.0
    %505 = vmatpush1.msra.mxu0 0.0
    %506 = vmatprep.subr.mxu0 0.0
    %507 = vmatpush1.msra.mxu0 0.0
    %508 = vmatprep.subr.mxu0 0.0
    %509 = vmatpush1.msra.mxu0 0.0
    %510 = vmatprep.subr.mxu0 0.0
    %511 = vmatpush1.msra.mxu0 0.0
    %512 = vmatprep.subr.mxu0 0.0
    %513 = vmatpush1.msra.mxu0 0.0
    %514 = vmatprep.subr.mxu0 0.0
    %515 = vmatpush1.msra.mxu0 0.0
    %516 = vmatprep.subr.mxu0 0.0
    %517 = vmatpush1.msra.mxu0 0.0
    %518 = vmatprep.subr.mxu0 0.0
    %519 = vmatpush1.msra.mxu0 0.0
    %520 = vmatprep.subr.mxu0 0.0
    %521 = vmatpush1.msra.mxu0 0.0
    %522 = vmatprep.subr.mxu0 0.0
    %523 = vmatpush1.msra.mxu0 0.0
    %524 = vmatprep.subr.mxu0 0.0
    %525 = vmatpush1.msra.mxu0 0.0
    %526 = vmatprep.subr.mxu0 0.0
    %527 = vmatpush1.msra.mxu0 0.0
    %528 = vmatprep.mubr.f32.mxu0 0.0
    %529 = vmatmul.mubr.f32.gmra.mrb[0].mxu0 %v352
    %v530 = vpop.f32.mrb[0].mxu0
    %v531 = vadd.f32 %v387, %v530
    %v532 = vpop.f32.mrb[0].mxu0
    %533 = vmatprep.mubr.f32.mxu0 0.0
    %534 = vmatmul.mubr.f32.gmra.mrb[0].mxu0 %v353
    %v535 = vpop.f32.mrb[0].mxu0
    %v536 = vadd.f32 %v392, %v535
    %v537 = vpop.f32.mrb[0].mxu0
    %538 = vmatprep.mubr.f32.mxu0 0.0
    %539 = vmatmul.mubr.f32.gmra.mrb[0].mxu0 %v354
    %v540 = vpop.f32.mrb[0].mxu0
    %v541 = vadd.f32 %v397, %v540
    %v542 = vpop.f32.mrb[0].mxu0
    %543 = vmatprep.mubr.f32.mxu0 0.0
    %544 = vmatmul.mubr.f32.gmra.mrb[0].mxu0 %v355
    %v545 = vpop.f32.mrb[0].mxu0
    %v546 = vadd.f32 %v402, %v545
    %v547 = vpop.f32.mrb[0].mxu0
    %548 = vmatprep.mubr.f32.mxu0 0.0
    %549 = vmatmul.mubr.f32.gmra.mrb[0].mxu0 %v356
    %v550 = vpop.f32.mrb[0].mxu0
    %v551 = vadd.f32 %v407, %v550
    %v552 = vpop.f32.mrb[0].mxu0
    %553 = vmatprep.mubr.f32.mxu0 0.0
    %554 = vmatmul.mubr.f32.gmra.mrb[0].mxu0 %v357
    %v555 = vpop.f32.mrb[0].mxu0
    %v556 = vadd.f32 %v412, %v555
    %v557 = vpop.f32.mrb[0].mxu0
    %558 = vmatprep.mubr.f32.mxu0 0.0
    %559 = vmatmul.mubr.f32.gmra.mrb[0].mxu0 %v358
    %v560 = vpop.f32.mrb[0].mxu0
    %v561 = vadd.f32 %v417, %v560
    %v562 = vpop.f32.mrb[0].mxu0
    %563 = vmatprep.mubr.f32.mxu0 0.0
    %564 = vmatmul.mubr.f32.gmra.mrb[0].mxu0 %v359
    %v565 = vpop.f32.mrb[0].mxu0
    %v566 = vadd.f32 %v422, %v565
    %v567 = vpop.f32.mrb[0].mxu0
    %568 = vmatprep.mubr.f32.mxu0 0.0
    %569 = vmatmul.mubr.f32.gmra.mrb[0].mxu0 %v360
    %v570 = vpop.f32.mrb[0].mxu0
    %v571 = vadd.f32 %v427, %v570
    %v572 = vpop.f32.mrb[0].mxu0
    %573 = vmatprep.mubr.f32.mxu0 0.0
    %574 = vmatmul.mubr.f32.gmra.mrb[0].mxu0 %v361
    %v575 = vpop.f32.mrb[0].mxu0
    %v576 = vadd.f32 %v432, %v575
    %v577 = vpop.f32.mrb[0].mxu0
    %578 = vmatprep.mubr.f32.mxu0 0.0
    %579 = vmatmul.mubr.f32.gmra.mrb[0].mxu0 %v362
    %v580 = vpop.f32.mrb[0].mxu0
    %v581 = vadd.f32 %v437, %v580
    %v582 = vpop.f32.mrb[0].mxu0
    %583 = vmatprep.mubr.f32.mxu0 0.0
    %584 = vmatmul.mubr.f32.gmra.mrb[0].mxu0 %v363
    %v585 = vpop.f32.mrb[0].mxu0
    %v586 = vadd.f32 %v442, %v585
    %v587 = vpop.f32.mrb[0].mxu0
    %588 = vmatprep.mubr.f32.mxu0 0.0
    %589 = vmatmul.mubr.f32.gmra.mrb[0].mxu0 %v364
    %v590 = vpop.f32.mrb[0].mxu0
    %v591 = vadd.f32 %v447, %v590
    %v592 = vpop.f32.mrb[0].mxu0
    %593 = vmatprep.mubr.f32.mxu0 0.0
    %594 = vmatmul.mubr.f32.gmra.mrb[0].mxu0 %v365
    %v595 = vpop.f32.mrb[0].mxu0
    %v596 = vadd.f32 %v452, %v595
    %v597 = vpop.f32.mrb[0].mxu0
    %598 = vmatprep.mubr.f32.mxu0 0.0
    %599 = vmatmul.mubr.f32.gmra.mrb[0].mxu0 %v366
    %v600 = vpop.f32.mrb[0].mxu0
    %v601 = vadd.f32 %v457, %v600
    %v602 = vpop.f32.mrb[0].mxu0
    %603 = vmatprep.mubr.f32.mxu0 0.0
    %604 = vmatmul.mubr.f32.gmra.mrb[0].mxu0 %v367
    %v605 = vpop.f32.mrb[0].mxu0
    %v606 = vadd.f32 %v462, %v605
    %v607 = vpop.f32.mrb[0].mxu0
    %608 = vdwg.mxu0
    %v609 = vtanh.pop %v531
    %v610 = vtanh.pop %v536
    %v611 = vtanh.pop %v541
    %v612 = vtanh.pop %v546
    %v613 = vtanh.pop %v551
    %v614 = vtanh.pop %v556
    %v615 = vtanh.pop %v561
    %v616 = vtanh.pop %v566
    %v617 = vtanh.pop %v571
    %v618 = vtanh.pop %v576
    %v619 = vtanh.pop %v581
    %v620 = vtanh.pop %v586
    %v621 = vtanh.pop %v591
    %v622 = vtanh.pop %v596
    %v623 = vtanh.pop %v601
    %v624 = vtanh.pop %v606
    %v625 = vld [vmem:[%s5] sm:$0xff]
    %v626 = vld [vmem:[%s5 + $0x8] sm:$0xff]
    %v627 = vld [vmem:[%s5 + $0x10] sm:$0xff]
    %v628 = vld [vmem:[%s5 + $0x18] sm:$0xff]
    %v629 = vld [vmem:[%s5 + $0x20] sm:$0xff]
    %v630 = vld [vmem:[%s5 + $0x28] sm:$0xff]
    %v631 = vld [vmem:[%s5 + $0x30] sm:$0xff]
    %v632 = vld [vmem:[%s5 + $0x38] sm:$0xff]
    %v633 = vld [vmem:[%s5 + $0x40] sm:$0xff]
    %v634 = vld [vmem:[%s5 + $0x48] sm:$0xff]
    %v635 = vld [vmem:[%s5 + $0x50] sm:$0xff]
    %v636 = vld [vmem:[%s5 + $0x58] sm:$0xff]
    %v637 = vld [vmem:[%s5 + $0x60] sm:$0xff]
    %v638 = vld [vmem:[%s5 + $0x68] sm:$0xff]
    %v639 = vld [vmem:[%s5 + $0x70] sm:$0xff]
    %v640 = vld [vmem:[%s5 + $0x78] sm:$0xff]
    %642 = vset.pattern.permute.xlu0 0
    %643 = vperm.xlu0 %642, %v625
    %v644 = vpop.permute.xlu0 %643
    %647 = vset.pattern.permute.xlu0 0
    %648 = vperm.xlu0 %647, %v626
    %v649 = vpop.permute.xlu0 %648
    %652 = vset.pattern.permute.xlu0 0
    %653 = vperm.xlu0 %652, %v627
    %v654 = vpop.permute.xlu0 %653
    %657 = vset.pattern.permute.xlu0 0
    %658 = vperm.xlu0 %657, %v628
    %v659 = vpop.permute.xlu0 %658
    %662 = vset.pattern.permute.xlu0 0
    %663 = vperm.xlu0 %662, %v629
    %v664 = vpop.permute.xlu0 %663
    %667 = vset.pattern.permute.xlu0 0
    %668 = vperm.xlu0 %667, %v630
    %v669 = vpop.permute.xlu0 %668
    %672 = vset.pattern.permute.xlu0 0
    %673 = vperm.xlu0 %672, %v631
    %v674 = vpop.permute.xlu0 %673
    %677 = vset.pattern.permute.xlu0 0
    %678 = vperm.xlu0 %677, %v632
    %v679 = vpop.permute.xlu0 %678
    %682 = vset.pattern.permute.xlu0 0
    %683 = vperm.xlu0 %682, %v633
    %v684 = vpop.permute.xlu0 %683
    %687 = vset.pattern.permute.xlu0 0
    %688 = vperm.xlu0 %687, %v634
    %v689 = vpop.permute.xlu0 %688
    %692 = vset.pattern.permute.xlu0 0
    %693 = vperm.xlu0 %692, %v635
    %v694 = vpop.permute.xlu0 %693
    %697 = vset.pattern.permute.xlu0 0
    %698 = vperm.xlu0 %697, %v636
    %v699 = vpop.permute.xlu0 %698
    %702 = vset.pattern.permute.xlu0 0
    %703 = vperm.xlu0 %702, %v637
    %v704 = vpop.permute.xlu0 %703
    %707 = vset.pattern.permute.xlu0 0
    %708 = vperm.xlu0 %707, %v638
    %v709 = vpop.permute.xlu0 %708
    %712 = vset.pattern.permute.xlu0 0
    %713 = vperm.xlu0 %712, %v639
    %v714 = vpop.permute.xlu0 %713
    %717 = vset.pattern.permute.xlu0 0
    %718 = vperm.xlu0 %717, %v640
    %v719 = vpop.permute.xlu0 %718
    %v721 = vmul.f32 %v609, %v644
    %v722 = vmul.f32 %v610, %v649
    %v723 = vmul.f32 %v611, %v654
    %v724 = vmul.f32 %v612, %v659
    %v725 = vmul.f32 %v613, %v664
    %v726 = vmul.f32 %v614, %v669
    %v727 = vmul.f32 %v615, %v674
    %v728 = vmul.f32 %v616, %v679
    %v729 = vmul.f32 %v617, %v684
    %v730 = vmul.f32 %v618, %v689
    %v731 = vmul.f32 %v619, %v694
    %v732 = vmul.f32 %v620, %v699
    %v733 = vmul.f32 %v621, %v704
    %v734 = vmul.f32 %v622, %v709
    %v735 = vmul.f32 %v623, %v714
    %v736 = vmul.f32 %v624, %v719
    %v737 = vadd.f32 %v721, %v722
    %v738 = vadd.f32 %v737, %v723
    %v739 = vadd.f32 %v738, %v724
    %v740 = vadd.f32 %v739, %v725
    %v741 = vadd.f32 %v740, %v726
    %v742 = vadd.f32 %v741, %v727
    %v743 = vadd.f32 %v742, %v728
    %v744 = vadd.f32 %v743, %v729
    %v745 = vadd.f32 %v744, %v730
    %v746 = vadd.f32 %v745, %v731
    %v747 = vadd.f32 %v746, %v732
    %v748 = vadd.f32 %v747, %v733
    %v749 = vadd.f32 %v748, %v734
    %v750 = vadd.f32 %v749, %v735
    %v751 = vadd.f32 %v750, %v736
    %v752 = vrot.slane %v751, 4
    %v753 = vadd.f32 %v751, %v752
    %v754 = vrot.slane %v753, 2
    %v755 = vadd.f32 %v753, %v754
    %v756 = vrot.slane %v755, 1
    %v757 = vadd.f32 %v755, %v756
    %s758 = sld [smem:[#allocation2]]
    %v759 = vstv %s758
    %v760 = vadd.f32 %v757, %v759
    %761 = vst [vmem:[#allocation3] sm:$0x1] %v760
    // Predicated region
    $region30: #{tpu_custom_call.1} parent=1 // pred_check
      _
    $region31: #{tpu_custom_call.1} parent=1 // pred_check_branch
      %763 = sbr.rel (0) target = $region33
    $region32: #{tpu_custom_call.1} parent=1 // pred_region
      %s765 = ssub.s32 16, 16
      %766 = vsyncadd [#allocation4], %s765
      %s768 = sshll.u32 [#allocation3], 4
      %s769 = int_to_ptr.vmem [resolvable:$true] %s768
      %771 = dma.vmem_to_hbm [thread:$0]  %s769, 16, %s7, [#allocation4]
    $region33: #{tpu_custom_call.1} parent=1 // pred_fallthru
      _
    // Predicated region
    $region34: #{tpu_custom_call.1} parent=1 // pred_check
      _
    $region35: #{tpu_custom_call.1} parent=1 // pred_check_branch
      %773 = sbr.rel (0) target = $region37
    $region36: #{tpu_custom_call.1} parent=1 // pred_region
      %774 = dma.done [#allocation4], 16
    $region37: #{tpu_custom_call.1} parent=1 // pred_fallthru
      _
    %775 = vsyncpa [#allocation4], 1

</llo_original>
